<compile_context>
chip_gen: v7x
topology: tpu7x:2x2x1
jax: 0.10.0
libtpu: 0.0.40
codegen_flags: <defaults>
</compile_context>

<pallas_src>
from typing import Dict, List, Tuple

import jax
import jax.numpy as jnp
from jax.experimental import pallas as pl
from jax.experimental.pallas import tpu as pltpu

_LANE = 128
_SUBLANE = 8
_MAX_BATCH_TILE = 1024
_DEFAULT_SCOPED_VMEM = 30 * 1024 * 1024  # stay under the ~32 MiB default


def _round_up(x: int, m: int) -> int:
    return ((x + m - 1) // m) * m


def _pad2d(a: jax.Array, rows: int, cols: int) -> jax.Array:
    """Zero-pad a 2-D array up to (rows, cols)."""
    out = jnp.zeros((rows, cols), dtype=a.dtype)
    return out.at[: a.shape[0], : a.shape[1]].set(a)


def _init_linear(key: jax.Array, fan_in: int, fan_out: int) -> Tuple[jax.Array, jax.Array]:
    """torch.nn.Linear default init: U(-1/sqrt(fan_in), 1/sqrt(fan_in))."""
    kw, kb = jax.random.split(key)
    bound = 1.0 / (fan_in ** 0.5)
    w = jax.random.uniform(kw, (fan_in, fan_out), jnp.float32, -bound, bound)
    b = jax.random.uniform(kb, (1, fan_out), jnp.float32, -bound, bound)
    return w, b


def _make_beta_mlp_kernel(num_hidden: int, activation: str, max_ab: float):
    """Fused kernel body: cast + trunk matmuls/activations + fused alpha|beta head."""
    if activation == "tanh":
        act = jnp.tanh
    else:  # 'relu'
        act = lambda v: jnp.maximum(v, 0.0)

    def kernel(*refs):
        # refs = (x, W1, b1, ..., Wh, bh, W_heads, b_heads, out)
        x_ref = refs[0]
        wb_refs = refs[1:1 + 2 * (num_hidden + 1)]
        out_ref = refs[-1]

        # Fused `.float()` cast; hidden activations never leave VMEM/vregs.
        h = x_ref[...].astype(jnp.float32)
        for i in range(num_hidden):
            w = wb_refs[2 * i][...]
            b = wb_refs[2 * i + 1][...]
            h = act(jnp.dot(h, w, preferred_element_type=jnp.float32) + b)

        # Fused heads: one N = 2*A_pad matmul fills the 256-wide MXU (v6e/v7x).
        w_heads = wb_refs[2 * num_hidden][...]
        b_heads = wb_refs[2 * num_hidden + 1][...]
        ab = jnp.dot(h, w_heads, preferred_element_type=jnp.float32) + b_heads
        ab = jnp.clip(jnp.maximum(ab, 0.0) + 1.0, 1.0, max_ab)
        out_ref[...] = ab.astype(out_ref.dtype)

    return kernel


def _beta_mlp_pallas(x_2d: jax.Array,
                     padded_layers: List[Tuple[jax.Array, jax.Array]],
                     *, activation: str, max_ab: float) -> jax.Array:
    """Run the fused BetaMLP kernel on a (M, obs_dim) batch.

    `padded_layers` = [(W, b) for trunk layers..., (W_heads, b_heads)], where the
    trunk weights are lane-padded and the head is the concatenated/lane-padded
    [alpha | beta] layer.  Returns the (M, 2*A_pad) fused output slab.
    """
    M, K = x_2d.shape
    num_hidden = len(padded_layers) - 1
    out_lanes = padded_layers[-1][0].shape[1]          # 2 * A_pad

    # Batch tile: as large as possible (amortize per-step overhead), but keep
    # >= 2 grid steps when the batch allows it so v7x uses both TensorCores.
    tm = min(_MAX_BATCH_TILE, _round_up(pl.cdiv(max(M, 1), 2), _SUBLANE))
    tm = max(tm, _SUBLANE)
    grid_m = pl.cdiv(M, tm)

    kernel = _make_beta_mlp_kernel(num_hidden, activation, float(max_ab))

    # x streamed unpadded: last-dim block == full array dim (allowed), rows tiled.
    in_specs = [pl.BlockSpec((tm, K), lambda i: (i, 0))]
    flat_inputs: List[jax.Array] = [x_2d]
    for w, b in padded_layers:
        in_specs.append(pl.BlockSpec(w.shape, lambda i: (0, 0)))   # VMEM-resident
        in_specs.append(pl.BlockSpec(b.shape, lambda i: (0, 0)))
        flat_inputs.extend([w, b])

    out_spec = pl.BlockSpec((tm, out_lanes), lambda i: (i, 0))
    out_shape = jax.ShapeDtypeStruct((M, out_lanes), jnp.float32)

    # Cost estimate (advisory, helps XLA schedule around the custom call).
    flops = 0
    transcendentals = 0
    param_bytes = 0
    for li, (w, b) in enumerate(padded_layers):
        flops += 2 * M * w.shape[0] * w.shape[1]
        param_bytes += w.size * w.dtype.itemsize + b.size * b.dtype.itemsize
        if activation == "tanh" and li < num_hidden:
            transcendentals += M * w.shape[1]
    bytes_accessed = (x_2d.size * x_2d.dtype.itemsize
                      + M * out_lanes * 4
                      + param_bytes)
    cost = pl.CostEstimate(flops=flops, transcendentals=transcendentals,
                           bytes_accessed=bytes_accessed)

    # VMEM budgeting: only raise the limit if the (double-buffered) footprint
    # would blow past the default scoped VMEM (relevant for scaled-up configs,
    # especially on v7x with 64 MiB physical VMEM).
    max_width = max([out_lanes] + [w.shape[1] for w, _ in padded_layers])
    est_vmem = (2 * tm * K * 4              # x (double-buffered)
                + 2 * tm * out_lanes * 4    # output (double-buffered)
                + 2 * param_bytes           # weights/biases (double-buffered)
                + 3 * tm * max_width * 4)   # live activations / temporaries
    compiler_kwargs = dict(dimension_semantics=("parallel",))
    if est_vmem > _DEFAULT_SCOPED_VMEM:
        compiler_kwargs["vmem_limit_bytes"] = int(min(est_vmem * 1.25,
                                                      120 * 1024 * 1024))

    return pl.pallas_call(
        kernel,
        out_shape=out_shape,
        grid_spec=pltpu.PrefetchScalarGridSpec(
            num_scalar_prefetch=0,
            grid=(grid_m,),
            in_specs=in_specs,
            out_specs=out_spec,
        ),
        compiler_params=pltpu.CompilerParams(**compiler_kwargs),
        cost_estimate=cost,
    )(*flat_inputs)


# --------------------------------------------------------------------------
# Module hierarchy mirroring mp2.common.networks
# --------------------------------------------------------------------------
class BaseNetworkPallas:
    """Parent class (BaseNetwork)."""

    def __init__(self, config: Dict):
        self.config = dict(config)
        self.process_config()

    def process_config(self):
        self.config.setdefault("discrete", False)

    def forward(self, x):
        """Run network forward pass (abstract in the base class)."""
        pass

    def forward_with_processing(self, x):
        # torch.from_numpy(x).float(): the float32 cast is fused into the
        # Pallas kernel, so here we only ensure a device array.
        x = jnp.asarray(x)
        return self.forward(x)

    # TODO(synk): save/restore are torch.save/load state_dict serialization
    # (host-side I/O, no Pallas equivalent); omitted.


class MLPPallas(BaseNetworkPallas):
    """Configurable MLP: config processing + Linear parameter construction."""

    def __init__(self, config: Dict, key: jax.Array):
        super().__init__(config)
        sizes = ([self.config["obs_dim"]] + list(self.config["sizes"])
                 + [self.config["action_dim"]])
        keys = jax.random.split(key, len(sizes) - 1)
        # hidden Linear layers (activation after each) + final Linear
        self.layers: List[Tuple[jax.Array, jax.Array]] = [
            _init_linear(keys[h], sizes[h], sizes[h + 1]) for h in range(len(sizes) - 1)
        ]

    def process_config(self):
        super().process_config()
        if "obs_dim" not in self.config:
            raise KeyError("obs_dim must be included in network config.")
        if "action_dim" not in self.config:
            raise KeyError("action_dim must be included in network config.")
        self.config.setdefault("sizes", [100, 100])
        self.config.setdefault("activation", "tanh")
        if self.config["activation"].lower() not in ["tanh", "relu"]:
            raise ValueError("activation type not recognized.")

    def forward(self, x):
        # TODO(synk): plain MLP.forward (trunk + final Linear) is not exercised by
        # BetaMLP, which replaces the final Linear with alpha/beta heads.
        raise NotImplementedError


class BetaMLPPallas(MLPPallas):
    """BetaMLP: trunk (final Linear dropped) + alpha/beta heads, fused Pallas forward."""

    def __init__(self, config: Dict, key: jax.Array):
        k_mlp, k_alpha, k_beta = jax.random.split(key, 3)
        super().__init__(config, k_mlp)
        # torch: self.mlp = Sequential(*self.layers[:-1])  (drop final Linear)
        self.trunk = self.layers[:-1]
        hidden_last = self.config["sizes"][-1]
        action_dim = self.config["action_dim"]
        self.alpha_layer = _init_linear(k_alpha, hidden_last, action_dim)
        self.beta_layer = _init_linear(k_beta, hidden_last, action_dim)

        # --- Pre-pad / pre-fuse parameters ONCE at init. ---
        padded: List[Tuple[jax.Array, jax.Array]] = []
        for idx, (w, b) in enumerate(self.trunk):
            # First layer keeps its true obs_dim row count (x streamed unpadded).
            in_rows = w.shape[0] if idx == 0 else _round_up(w.shape[0], _LANE)
            out_cols = _round_up(w.shape[1], _LANE)
            padded.append((_pad2d(w, in_rows, out_cols), _pad2d(b, 1, out_cols)))
        # Fused [alpha | beta] head -> one N = 2*A_pad matmul / one output slab.
        h_pad = _round_up(hidden_last, _LANE)
        a_pad = _round_up(action_dim, _LANE)
        wa, ba = self.alpha_layer
        wb, bb = self.beta_layer
        w_heads = jnp.concatenate([_pad2d(wa, h_pad, a_pad),
                                   _pad2d(wb, h_pad, a_pad)], axis=1)
        b_heads = jnp.concatenate([_pad2d(ba, 1, a_pad),
                                   _pad2d(bb, 1, a_pad)], axis=1)
        padded.append((w_heads, b_heads))
        self._padded = padded
        self._a_pad = a_pad

        # One jitted forward: pallas_call + output splits live under a single
        # XLA program (no separate dispatches for the lane slices).
        obs_dim = self.config["obs_dim"]
        activation = self.config["activation"].lower()
        max_ab = float(self.config["max_ab"])

        def _fwd(x):
            lead = x.shape[:-1]
            x2 = x.reshape((-1, obs_dim)).astype(jnp.float32)
            out = _beta_mlp_pallas(x2, padded, activation=activation, max_ab=max_ab)
            alpha = out[:, :action_dim].reshape(lead + (action_dim,))
            beta = out[:, a_pad:a_pad + action_dim].reshape(lead + (action_dim,))
            return alpha, beta

        self._forward_fn = jax.jit(_fwd)

    def process_config(self):
        super().process_config()
        self.config["discrete"] = 0
        self.config.setdefault("max_ab", 15)

    def forward(self, x):
        return self._forward_fn(jnp.asarray(x))


# --------------------------------------------------------------------------
# Pure-JAX reference (exact torch semantics) for validation
# --------------------------------------------------------------------------
def _ref_beta_mlp(x, trunk, alpha_layer, beta_layer, *, activation, max_ab):
    act = jnp.tanh if activation == "tanh" else (lambda v: jnp.maximum(v, 0.0))
    h = x.astype(jnp.float32)
    for w, b in trunk:
        h = act(h @ w + b)
    wa, ba = alpha_layer
    wb, bb = beta_layer
    a = jnp.clip(jnp.maximum(h @ wa + ba, 0.0) + 1.0, 1.0, max_ab)
    bt = jnp.clip(jnp.maximum(h @ wb + bb, 0.0) + 1.0, 1.0, max_ab)
    return a, bt


if __name__ == "__main__":
    key = jax.random.PRNGKey(0)
    k_params, k_x1, k_x2, k_x3 = jax.random.split(key, 4)

    # Small config: defaults sizes=[100,100], activation='tanh', max_ab=15.
    config = {"obs_dim": 17, "action_dim": 6}
    net = BetaMLPPallas(config, k_params)

    assert net.config["discrete"] == 0
    assert net.config["max_ab"] == 15
    assert net.config["sizes"] == [100, 100]
    assert net.config["activation"] == "tanh"

    def check(x):
        alpha, beta = net.forward_with_processing(x)
        alpha = jax.block_until_ready(alpha)
        beta = jax.block_until_ready(beta)
        expect_shape = x.shape[:-1] + (config["action_dim"],)
        assert alpha.shape == expect_shape and beta.shape == expect_shape
        assert alpha.dtype == jnp.float32 and beta.dtype == jnp.float32
        ref_a, ref_b = _ref_beta_mlp(
            x.reshape((-1, config["obs_dim"])),
            net.trunk, net.alpha_layer, net.beta_layer,
            activation="tanh", max_ab=15.0)
        ref_a = ref_a.reshape(expect_shape)
        ref_b = ref_b.reshape(expect_shape)
        assert jnp.allclose(alpha, ref_a, rtol=1e-2, atol=1e-2), (alpha, ref_a)
        assert jnp.allclose(beta, ref_b, rtol=1e-2, atol=1e-2), (beta, ref_b)
        assert bool(jnp.all(alpha >= 1.0)) and bool(jnp.all(alpha <= 15.0))
        assert bool(jnp.all(beta >= 1.0)) and bool(jnp.all(beta <= 15.0))

    # batch=2 (tiny, grid=1), batch=50 (grid=2 with row overhang), 3-D lead shape.
    check(jax.random.normal(k_x1, (2, config["obs_dim"]), dtype=jnp.float32))
    check(jax.random.normal(k_x2, (50, config["obs_dim"]), dtype=jnp.float32))
    check(jax.random.normal(k_x3, (3, 5, config["obs_dim"]), dtype=jnp.float32))

    print("KERNEL_OK")
</pallas_src>

<mosaic_0001>
module attributes {stable_mosaic.version = 11 : i64} {
  func.func @kernel(%arg0: i32, %arg1: memref<8x17xf32, #tpu.memory_space<vmem>>, %arg2: memref<17x128xf32, #tpu.memory_space<vmem>>, %arg3: memref<1x128xf32, #tpu.memory_space<vmem>>, %arg4: memref<128x128xf32, #tpu.memory_space<vmem>>, %arg5: memref<1x128xf32, #tpu.memory_space<vmem>>, %arg6: memref<128x256xf32, #tpu.memory_space<vmem>>, %arg7: memref<1x256xf32, #tpu.memory_space<vmem>>, %arg8: memref<8x256xf32, #tpu.memory_space<vmem>>) attributes {dimension_semantics = [#tpu.dimension_semantics<parallel>], iteration_bounds = array<i64: 1>, scalar_prefetch = 0 : i64, scratch_operands = 0 : i64, tpu.core_type = #tpu.core_type<tc>, window_params = [{transform_indices = @transform_0, window_bounds = array<i64: 8, 17>}, {pipeline_mode = #tpu.pipeline_mode<synchronous>, transform_indices = @transform_1, window_bounds = array<i64: 17, 128>}, {pipeline_mode = #tpu.pipeline_mode<synchronous>, transform_indices = @transform_2, window_bounds = array<i64: 1, 128>}, {pipeline_mode = #tpu.pipeline_mode<synchronous>, transform_indices = @transform_3, window_bounds = array<i64: 128, 128>}, {pipeline_mode = #tpu.pipeline_mode<synchronous>, transform_indices = @transform_4, window_bounds = array<i64: 1, 128>}, {pipeline_mode = #tpu.pipeline_mode<synchronous>, transform_indices = @transform_5, window_bounds = array<i64: 128, 256>}, {pipeline_mode = #tpu.pipeline_mode<synchronous>, transform_indices = @transform_6, window_bounds = array<i64: 1, 256>}, {transform_indices = @transform_7, window_bounds = array<i64: 8, 256>}]} {
    %c0 = arith.constant 0 : index
    %c0_0 = arith.constant 0 : index
    %0 = vector.load %arg1[%c0, %c0_0] : memref<8x17xf32, #tpu.memory_space<vmem>>, vector<8x17xf32>
    %c0_1 = arith.constant 0 : index
    %c0_2 = arith.constant 0 : index
    %1 = vector.load %arg2[%c0_1, %c0_2] : memref<17x128xf32, #tpu.memory_space<vmem>>, vector<17x128xf32>
    %c0_3 = arith.constant 0 : index
    %c0_4 = arith.constant 0 : index
    %2 = vector.load %arg3[%c0_3, %c0_4] : memref<1x128xf32, #tpu.memory_space<vmem>>, vector<1x128xf32>
    %cst = arith.constant dense<0.000000e+00> : vector<8x128xf32>
    %3 = tpu.matmul %0, %1, %cst {dimension_numbers = #tpu.dot_dimension_numbers<[1], [0], [0], [1], [0, 0, 1, 1], [], []>} : vector<8x17xf32>, vector<17x128xf32>, vector<8x128xf32> -> vector<8x128xf32>
    %4 = vector.broadcast %2 : vector<1x128xf32> to vector<8x128xf32>
    %5 = arith.addf %3, %4 : vector<8x128xf32>
    %6 = math.tanh %5 : vector<8x128xf32>
    %c0_5 = arith.constant 0 : index
    %c0_6 = arith.constant 0 : index
    %7 = vector.load %arg4[%c0_5, %c0_6] : memref<128x128xf32, #tpu.memory_space<vmem>>, vector<128x128xf32>
    %c0_7 = arith.constant 0 : index
    %c0_8 = arith.constant 0 : index
    %8 = vector.load %arg5[%c0_7, %c0_8] : memref<1x128xf32, #tpu.memory_space<vmem>>, vector<1x128xf32>
    %cst_9 = arith.constant dense<0.000000e+00> : vector<8x128xf32>
    %9 = tpu.matmul %6, %7, %cst_9 {dimension_numbers = #tpu.dot_dimension_numbers<[1], [0], [0], [1], [0, 0, 1, 1], [], []>} : vector<8x128xf32>, vector<128x128xf32>, vector<8x128xf32> -> vector<8x128xf32>
    %10 = vector.broadcast %8 : vector<1x128xf32> to vector<8x128xf32>
    %11 = arith.addf %9, %10 : vector<8x128xf32>
    %12 = math.tanh %11 : vector<8x128xf32>
    %c0_10 = arith.constant 0 : index
    %c0_11 = arith.constant 0 : index
    %13 = vector.load %arg6[%c0_10, %c0_11] : memref<128x256xf32, #tpu.memory_space<vmem>>, vector<128x256xf32>
    %c0_12 = arith.constant 0 : index
    %c0_13 = arith.constant 0 : index
    %14 = vector.load %arg7[%c0_12, %c0_13] : memref<1x256xf32, #tpu.memory_space<vmem>>, vector<1x256xf32>
    %cst_14 = arith.constant dense<0.000000e+00> : vector<8x256xf32>
    %15 = tpu.matmul %12, %13, %cst_14 {dimension_numbers = #tpu.dot_dimension_numbers<[1], [0], [0], [1], [0, 0, 1, 1], [], []>} : vector<8x128xf32>, vector<128x256xf32>, vector<8x256xf32> -> vector<8x256xf32>
    %16 = vector.broadcast %14 : vector<1x256xf32> to vector<8x256xf32>
    %17 = arith.addf %15, %16 : vector<8x256xf32>
    %cst_15 = arith.constant 0.000000e+00 : f32
    %18 = vector.broadcast %cst_15 : f32 to vector<8x256xf32>
    %19 = arith.maximumf %17, %18 : vector<8x256xf32>
    %cst_16 = arith.constant 1.000000e+00 : f32
    %20 = vector.broadcast %cst_16 : f32 to vector<8x256xf32>
    %21 = arith.addf %19, %20 : vector<8x256xf32>
    %cst_17 = arith.constant 1.000000e+00 : f32
    %cst_18 = arith.constant 1.500000e+01 : f32
    %22 = vector.broadcast %cst_17 : f32 to vector<8x256xf32>
    %23 = arith.maximumf %22, %21 : vector<8x256xf32>
    %24 = vector.broadcast %cst_18 : f32 to vector<8x256xf32>
    %25 = arith.minimumf %24, %23 : vector<8x256xf32>
    %c0_19 = arith.constant 0 : index
    %c0_20 = arith.constant 0 : index
    %26 = vector.load %arg8[%c0_19, %c0_20] : memref<8x256xf32, #tpu.memory_space<vmem>>, vector<8x256xf32>
    tpu.vector_store %arg8[%c0_19, %c0_20], %25 {strides = array<i32>} : memref<8x256xf32, #tpu.memory_space<vmem>>, vector<8x256xf32>,
    return
  }
  func.func @transform_0(%arg0: i32) -> (i32, i32) {
    %c0_i32 = arith.constant 0 : i32
    %c0_i32_0 = arith.constant 0 : i32
    return %arg0, %c0_i32 : i32, i32
  }
  func.func @transform_1(%arg0: i32) -> (i32, i32) {
    %c0_i32 = arith.constant 0 : i32
    %c0_i32_0 = arith.constant 0 : i32
    %c0_i32_1 = arith.constant 0 : i32
    return %c0_i32, %c0_i32_0 : i32, i32
  }
  func.func @transform_2(%arg0: i32) -> (i32, i32) {
    %c0_i32 = arith.constant 0 : i32
    %c0_i32_0 = arith.constant 0 : i32
    %c0_i32_1 = arith.constant 0 : i32
    return %c0_i32, %c0_i32_0 : i32, i32
  }
  func.func @transform_3(%arg0: i32) -> (i32, i32) {
    %c0_i32 = arith.constant 0 : i32
    %c0_i32_0 = arith.constant 0 : i32
    %c0_i32_1 = arith.constant 0 : i32
    return %c0_i32, %c0_i32_0 : i32, i32
  }
  func.func @transform_4(%arg0: i32) -> (i32, i32) {
    %c0_i32 = arith.constant 0 : i32
    %c0_i32_0 = arith.constant 0 : i32
    %c0_i32_1 = arith.constant 0 : i32
    return %c0_i32, %c0_i32_0 : i32, i32
  }
  func.func @transform_5(%arg0: i32) -> (i32, i32) {
    %c0_i32 = arith.constant 0 : i32
    %c0_i32_0 = arith.constant 0 : i32
    %c0_i32_1 = arith.constant 0 : i32
    return %c0_i32, %c0_i32_0 : i32, i32
  }
  func.func @transform_6(%arg0: i32) -> (i32, i32) {
    %c0_i32 = arith.constant 0 : i32
    %c0_i32_0 = arith.constant 0 : i32
    %c0_i32_1 = arith.constant 0 : i32
    return %c0_i32, %c0_i32_0 : i32, i32
  }
  func.func @transform_7(%arg0: i32) -> (i32, i32) {
    %c0_i32 = arith.constant 0 : i32
    %c0_i32_0 = arith.constant 0 : i32
    return %arg0, %c0_i32 : i32, i32
  }
}

</mosaic_0001>

<llo_original>
// kernel: _fwd.1
$region0: #{_fwd.1}
  #allocation0 [shape = 'u32[]', space=smem, size = 0x4, offset = 0x4, fixed_abs, tag = 'smem constant byte address 0x4 - core index']
  #allocation1 [shape = 'u32[144,128]{1,0:T(1,128)}', space=vmem, size = 0x12000, scoped, tag = 'internal scratch']
  %s0 = inlined_call_operand.hbm [shape: f32[2,17], index: 0, kind: input, shape index: {}]
  %s1 = inlined_call_operand.hbm [shape: f32[17,128], index: 1, kind: input, shape index: {}]
  %s2 = inlined_call_operand.vmem [shape: f32[1,128], index: 2, kind: input, shape index: {}]
  %s3 = inlined_call_operand.hbm [shape: f32[128,128], index: 3, kind: input, shape index: {}]
  %s4 = inlined_call_operand.vmem [shape: f32[1,128], index: 4, kind: input, shape index: {}]
  %s5 = inlined_call_operand.hbm [shape: f32[128,256], index: 5, kind: input, shape index: {}]
  %s6 = inlined_call_operand.vmem [shape: f32[1,256], index: 6, kind: input, shape index: {}]
  %s7 = inlined_call_operand.vmem [shape: f32[2,256], index: 7, kind: output, shape index: {}]
  %s8 = sld [smem:[#allocation0]]
  $region84: #{_fwd.1} parent=0
    _
  %s10 = ssub.s32 1, %s8
  %s11 = scalar_select 0, %s10, %s8
  $region1: #{_fwd.1} parent=0
    #allocation2 [shape = 'u8[4096]{0}', space=vmem, size = 0x1000, scoped, tag = 'input window, operand 0, single buffered']
    #allocation3 [shape = 's32[1]{0}', space=sflag, size = 0x4, scoped, tag = 'scoped memory for _fwd.1']
    #allocation4 [shape = 'u8[12288]{0}', space=vmem, size = 0x3000, scoped, tag = 'input window, operand 1, single buffered']
    #allocation5 [shape = 's32[1]{0}', space=sflag, size = 0x4, scoped, tag = 'scoped memory for _fwd.1']
    #allocation6 [shape = 'u8[65536]{0}', space=vmem, size = 0x10000, scoped, tag = 'input window, operand 3, single buffered']
    #allocation7 [shape = 'u8[131072]{0}', space=vmem, size = 0x20000, scoped, tag = 'input window, operand 5, single buffered']
    #allocation8 [shape = 's32[1]{0}', space=sflag, size = 0x4, scoped, tag = 'scoped memory for _fwd.1']
    #allocation9 [shape = 'u8[8192]{0}', space=vmem, size = 0x2000, scoped, tag = 'output window, operand 0, single buffered']
    %12 = vsyncpa [#allocation3], 0
    %13 = vsyncpa [#allocation5], 0
    %14 = vsyncpa [#allocation8], 0
    // Predicated region
    $region2: #{_fwd.1} parent=1 // pred_check
      _
    $region3: #{_fwd.1} parent=1 // pred_check_branch
      %16 = sbr.rel (0) target = $region5
    $region4: #{_fwd.1} parent=1 // pred_region
      %s18 = ssub.s32 128, 32
      %19 = vsyncadd [#allocation3], %s18
      %s20 = sshll.u32 [#allocation2], 4
      %s21 = int_to_ptr.vmem [resolvable:$true] %s20
      %26 = dma.hbm_to_vmem [thread:$0]  %s0, 32, %s21, [#allocation3], 32, 32, 2
    $region5: #{_fwd.1} parent=1 // pred_fallthru
      _
    // Predicated region
    $region6: #{_fwd.1} parent=1 // pred_check
      _
    $region7: #{_fwd.1} parent=1 // pred_check_branch
      %28 = sbr.rel (0) target = $region9
    $region8: #{_fwd.1} parent=1 // pred_region
      %s30 = ssub.s32 384, 384
      %31 = vsyncadd [#allocation5], %s30
      %s32 = sshll.u32 [#allocation4], 4
      %s33 = int_to_ptr.vmem [resolvable:$true] %s32
      %38 = dma.hbm_to_vmem [thread:$0]  %s1, 384, %s33, [#allocation5], 128, 128, 8
    $region9: #{_fwd.1} parent=1 // pred_fallthru
      _
    // Predicated region
    $region10: #{_fwd.1} parent=1 // pred_check
      _
    $region11: #{_fwd.1} parent=1 // pred_check_branch
      %40 = sbr.rel (0) target = $region13
    $region12: #{_fwd.1} parent=1 // pred_region
      _
    $region13: #{_fwd.1} parent=1 // pred_fallthru
      _
    // Predicated region
    $region14: #{_fwd.1} parent=1 // pred_check
      _
    $region15: #{_fwd.1} parent=1 // pred_check_branch
      %42 = sbr.rel (0) target = $region17
    $region16: #{_fwd.1} parent=1 // pred_region
      %s44 = ssub.s32 2048, 2048
      %45 = vsyncadd [#allocation5], %s44
      %s46 = sshll.u32 [#allocation6], 4
      %s47 = int_to_ptr.vmem [resolvable:$true] %s46
      %52 = dma.hbm_to_vmem [thread:$0]  %s3, 2048, %s47, [#allocation5], 128, 128, 8
    $region17: #{_fwd.1} parent=1 // pred_fallthru
      _
    // Predicated region
    $region18: #{_fwd.1} parent=1 // pred_check
      _
    $region19: #{_fwd.1} parent=1 // pred_check_branch
      %54 = sbr.rel (0) target = $region21
    $region20: #{_fwd.1} parent=1 // pred_region
      _
    $region21: #{_fwd.1} parent=1 // pred_fallthru
      _
    // Predicated region
    $region22: #{_fwd.1} parent=1 // pred_check
      _
    $region23: #{_fwd.1} parent=1 // pred_check_branch
      %56 = sbr.rel (0) target = $region25
    $region24: #{_fwd.1} parent=1 // pred_region
      %s58 = ssub.s32 4096, 4096
      %59 = vsyncadd [#allocation8], %s58
      %s60 = sshll.u32 [#allocation7], 4
      %s61 = int_to_ptr.vmem [resolvable:$true] %s60
      %66 = dma.hbm_to_vmem [thread:$0]  %s5, 4096, %s61, [#allocation8], 256, 256, 16
    $region25: #{_fwd.1} parent=1 // pred_fallthru
      _
    // Predicated region
    $region26: #{_fwd.1} parent=1 // pred_check
      _
    $region27: #{_fwd.1} parent=1 // pred_check_branch
      %68 = sbr.rel (0) target = $region29
    $region28: #{_fwd.1} parent=1 // pred_region
      _
    $region29: #{_fwd.1} parent=1 // pred_fallthru
      _
    // Predicated region
    $region30: #{_fwd.1} parent=1 // pred_check
      _
    $region31: #{_fwd.1} parent=1 // pred_check_branch
      %70 = sbr.rel (0) target = $region33
    $region32: #{_fwd.1} parent=1 // pred_region
      %71 = dma.done [#allocation3], 128
    $region33: #{_fwd.1} parent=1 // pred_fallthru
      _
    // Predicated region
    $region34: #{_fwd.1} parent=1 // pred_check
      _
    $region35: #{_fwd.1} parent=1 // pred_check_branch
      %73 = sbr.rel (0) target = $region37
    $region36: #{_fwd.1} parent=1 // pred_region
      %74 = dma.done [#allocation5], 384
    $region37: #{_fwd.1} parent=1 // pred_fallthru
      _
    // Predicated region
    $region38: #{_fwd.1} parent=1 // pred_check
      _
    $region39: #{_fwd.1} parent=1 // pred_check_branch
      %76 = sbr.rel (0) target = $region41
    $region40: #{_fwd.1} parent=1 // pred_region
      %77 = dma.done [#allocation5], 2048
    $region41: #{_fwd.1} parent=1 // pred_fallthru
      _
    // Predicated region
    $region42: #{_fwd.1} parent=1 // pred_check
      _
    $region43: #{_fwd.1} parent=1 // pred_check_branch
      %79 = sbr.rel (0) target = $region45
    $region44: #{_fwd.1} parent=1 // pred_region
      %80 = dma.done [#allocation8], 4096
    $region45: #{_fwd.1} parent=1 // pred_fallthru
      _
    %v81 = vld [vmem:[#allocation2] sm:$0xff]
    %v82 = vld [vmem:[#allocation4] sm:$0xff]
    %v83 = vld [vmem:[#allocation4 + $0x8] sm:$0xff]
    %v84 = vld [vmem:[#allocation4 + $0x10] sm:$0x1]
    %v85 = vld [vmem:[%s2] sm:$0x1]
    %v87 = vlaneseq
    %v88 = vshrl.u32 %v87, 7
    %v89 = vsub.s32 0, %v88
    %v90 = vrot.slane %v85, %v89
    %vm92 = vcmask 138240
    %v94 = vsel %vm92, %v81, 0
    %vm96 = vcmask 1040384
    %v98 = vsel %vm96, %v84, 0
    %100 = vmatprep.subr.mxu0 0.0
    %101 = vmatpush1.msra.mxu0 %v82
    %102 = vmatprep.subr.mxu0 0.0
    %103 = vmatpush1.msra.mxu0 %v83
    %104 = vmatprep.subr.mxu0 0.0
    %105 = vmatpush1.msra.mxu0 %v98
    %106 = vmatprep.subr.mxu0 0.0
    %107 = vmatpush1.msra.mxu0 0.0
    %108 = vmatprep.subr.mxu0 0.0
    %109 = vmatpush1.msra.mxu0 0.0
    %110 = vmatprep.subr.mxu0 0.0
    %111 = vmatpush1.msra.mxu0 0.0
    %112 = vmatprep.subr.mxu0 0.0
    %113 = vmatpush1.msra.mxu0 0.0
    %114 = vmatprep.subr.mxu0 0.0
    %115 = vmatpush1.msra.mxu0 0.0
    %116 = vmatprep.subr.mxu0 0.0
    %117 = vmatpush1.msra.mxu0 0.0
    %118 = vmatprep.subr.mxu0 0.0
    %119 = vmatpush1.msra.mxu0 0.0
    %120 = vmatprep.subr.mxu0 0.0
    %121 = vmatpush1.msra.mxu0 0.0
    %122 = vmatprep.subr.mxu0 0.0
    %123 = vmatpush1.msra.mxu0 0.0
    %124 = vmatprep.subr.mxu0 0.0
    %125 = vmatpush1.msra.mxu0 0.0
    %126 = vmatprep.subr.mxu0 0.0
    %127 = vmatpush1.msra.mxu0 0.0
    %128 = vmatprep.subr.mxu0 0.0
    %129 = vmatpush1.msra.mxu0 0.0
    %130 = vmatprep.subr.mxu0 0.0
    %131 = vmatpush1.msra.mxu0 0.0
    %132 = vmatprep.subr.mxu0 0.0
    %133 = vmatpush1.msra.mxu0 0.0
    %134 = vmatprep.subr.mxu0 0.0
    %135 = vmatpush1.msra.mxu0 0.0
    %136 = vmatprep.subr.mxu0 0.0
    %137 = vmatpush1.msra.mxu0 0.0
    %138 = vmatprep.subr.mxu0 0.0
    %139 = vmatpush1.msra.mxu0 0.0
    %140 = vmatprep.subr.mxu0 0.0
    %141 = vmatpush1.msra.mxu0 0.0
    %142 = vmatprep.subr.mxu0 0.0
    %143 = vmatpush1.msra.mxu0 0.0
    %144 = vmatprep.subr.mxu0 0.0
    %145 = vmatpush1.msra.mxu0 0.0
    %146 = vmatprep.subr.mxu0 0.0
    %147 = vmatpush1.msra.mxu0 0.0
    %148 = vmatprep.subr.mxu0 0.0
    %149 = vmatpush1.msra.mxu0 0.0
    %150 = vmatprep.subr.mxu0 0.0
    %151 = vmatpush1.msra.mxu0 0.0
    %152 = vmatprep.subr.mxu0 0.0
    %153 = vmatpush1.msra.mxu0 0.0
    %154 = vmatprep.subr.mxu0 0.0
    %155 = vmatpush1.msra.mxu0 0.0
    %156 = vmatprep.subr.mxu0 0.0
    %157 = vmatpush1.msra.mxu0 0.0
    %158 = vmatprep.subr.mxu0 0.0
    %159 = vmatpush1.msra.mxu0 0.0
    %160 = vmatprep.subr.mxu0 0.0
    %161 = vmatpush1.msra.mxu0 0.0
    %162 = vmatprep.subr.mxu0 0.0
    %163 = vmatpush1.msra.mxu0 0.0
    %164 = vmatprep.mubr.f32.mxu0 0.0
    %165 = vmatmul.mubr.f32.gmra.mrb[0].mxu0 %v94
    %v166 = vpop.f32.mrb[0].mxu0
    %v167 = vadd.f32 %v90, %v166
    %v168 = vpop.f32.mrb[0].mxu0
    %169 = vdwg.mxu0
    %v170 = vtanh.pop %v167
    %v171 = vld [vmem:[#allocation6] sm:$0xff]
    %v172 = vld [vmem:[#allocation6 + $0x8] sm:$0xff]
    %v173 = vld [vmem:[#allocation6 + $0x10] sm:$0xff]
    %v174 = vld [vmem:[#allocation6 + $0x18] sm:$0xff]
    %v175 = vld [vmem:[#allocation6 + $0x20] sm:$0xff]
    %v176 = vld [vmem:[#allocation6 + $0x28] sm:$0xff]
    %v177 = vld [vmem:[#allocation6 + $0x30] sm:$0xff]
    %v178 = vld [vmem:[#allocation6 + $0x38] sm:$0xff]
    %v179 = vld [vmem:[#allocation6 + $0x40] sm:$0xff]
    %v180 = vld [vmem:[#allocation6 + $0x48] sm:$0xff]
    %v181 = vld [vmem:[#allocation6 + $0x50] sm:$0xff]
    %v182 = vld [vmem:[#allocation6 + $0x58] sm:$0xff]
    %v183 = vld [vmem:[#allocation6 + $0x60] sm:$0xff]
    %v184 = vld [vmem:[#allocation6 + $0x68] sm:$0xff]
    %v185 = vld [vmem:[#allocation6 + $0x70] sm:$0xff]
    %v186 = vld [vmem:[#allocation6 + $0x78] sm:$0xff]
    %v187 = vld [vmem:[%s4] sm:$0x1]
    %v189 = vlaneseq
    %v190 = vshrl.u32 %v189, 7
    %v191 = vsub.s32 0, %v190
    %v192 = vrot.slane %v187, %v191
    %194 = vmatprep.subr.mxu0 0.0
    %195 = vmatpush1.msra.mxu0 %v171
    %196 = vmatprep.subr.mxu0 0.0
    %197 = vmatpush1.msra.mxu0 %v172
    %198 = vmatprep.subr.mxu0 0.0
    %199 = vmatpush1.msra.mxu0 %v173
    %200 = vmatprep.subr.mxu0 0.0
    %201 = vmatpush1.msra.mxu0 %v174
    %202 = vmatprep.subr.mxu0 0.0
    %203 = vmatpush1.msra.mxu0 %v175
    %204 = vmatprep.subr.mxu0 0.0
    %205 = vmatpush1.msra.mxu0 %v176
    %206 = vmatprep.subr.mxu0 0.0
    %207 = vmatpush1.msra.mxu0 %v177
    %208 = vmatprep.subr.mxu0 0.0
    %209 = vmatpush1.msra.mxu0 %v178
    %210 = vmatprep.subr.mxu0 0.0
    %211 = vmatpush1.msra.mxu0 %v179
    %212 = vmatprep.subr.mxu0 0.0
    %213 = vmatpush1.msra.mxu0 %v180
    %214 = vmatprep.subr.mxu0 0.0
    %215 = vmatpush1.msra.mxu0 %v181
    %216 = vmatprep.subr.mxu0 0.0
    %217 = vmatpush1.msra.mxu0 %v182
    %218 = vmatprep.subr.mxu0 0.0
    %219 = vmatpush1.msra.mxu0 %v183
    %220 = vmatprep.subr.mxu0 0.0
    %221 = vmatpush1.msra.mxu0 %v184
    %222 = vmatprep.subr.mxu0 0.0
    %223 = vmatpush1.msra.mxu0 %v185
    %224 = vmatprep.subr.mxu0 0.0
    %225 = vmatpush1.msra.mxu0 %v186
    %226 = vmatprep.subr.mxu0 0.0
    %227 = vmatpush1.msra.mxu0 0.0
    %228 = vmatprep.subr.mxu0 0.0
    %229 = vmatpush1.msra.mxu0 0.0
    %230 = vmatprep.subr.mxu0 0.0
    %231 = vmatpush1.msra.mxu0 0.0
    %232 = vmatprep.subr.mxu0 0.0
    %233 = vmatpush1.msra.mxu0 0.0
    %234 = vmatprep.subr.mxu0 0.0
    %235 = vmatpush1.msra.mxu0 0.0
    %236 = vmatprep.subr.mxu0 0.0
    %237 = vmatpush1.msra.mxu0 0.0
    %238 = vmatprep.subr.mxu0 0.0
    %239 = vmatpush1.msra.mxu0 0.0
    %240 = vmatprep.subr.mxu0 0.0
    %241 = vmatpush1.msra.mxu0 0.0
    %242 = vmatprep.subr.mxu0 0.0
    %243 = vmatpush1.msra.mxu0 0.0
    %244 = vmatprep.subr.mxu0 0.0
    %245 = vmatpush1.msra.mxu0 0.0
    %246 = vmatprep.subr.mxu0 0.0
    %247 = vmatpush1.msra.mxu0 0.0
    %248 = vmatprep.subr.mxu0 0.0
    %249 = vmatpush1.msra.mxu0 0.0
    %250 = vmatprep.subr.mxu0 0.0
    %251 = vmatpush1.msra.mxu0 0.0
    %252 = vmatprep.subr.mxu0 0.0
    %253 = vmatpush1.msra.mxu0 0.0
    %254 = vmatprep.subr.mxu0 0.0
    %255 = vmatpush1.msra.mxu0 0.0
    %256 = vmatprep.subr.mxu0 0.0
    %257 = vmatpush1.msra.mxu0 0.0
    %258 = vmatprep.mubr.f32.mxu0 0.0
    %259 = vmatmul.mubr.f32.gmra.mrb[0].mxu0 %v170
    %v260 = vpop.f32.mrb[0].mxu0
    %v261 = vadd.f32 %v192, %v260
    %v262 = vpop.f32.mrb[0].mxu0
    %263 = vdwg.mxu0
    %v264 = vtanh.pop %v261
    %v265 = vld [vmem:[#allocation7] sm:$0xff]
    %v266 = vld [vmem:[#allocation7 + $0x8] sm:$0xff]
    %v267 = vld [vmem:[#allocation7 + $0x10] sm:$0xff]
    %v268 = vld [vmem:[#allocation7 + $0x18] sm:$0xff]
    %v269 = vld [vmem:[#allocation7 + $0x20] sm:$0xff]
    %v270 = vld [vmem:[#allocation7 + $0x28] sm:$0xff]
    %v271 = vld [vmem:[#allocation7 + $0x30] sm:$0xff]
    %v272 = vld [vmem:[#allocation7 + $0x38] sm:$0xff]
    %v273 = vld [vmem:[#allocation7 + $0x40] sm:$0xff]
    %v274 = vld [vmem:[#allocation7 + $0x48] sm:$0xff]
    %v275 = vld [vmem:[#allocation7 + $0x50] sm:$0xff]
    %v276 = vld [vmem:[#allocation7 + $0x58] sm:$0xff]
    %v277 = vld [vmem:[#allocation7 + $0x60] sm:$0xff]
    %v278 = vld [vmem:[#allocation7 + $0x68] sm:$0xff]
    %v279 = vld [vmem:[#allocation7 + $0x70] sm:$0xff]
    %v280 = vld [vmem:[#allocation7 + $0x78] sm:$0xff]
    %v281 = vld [vmem:[#allocation7 + $0x80] sm:$0xff]
    %v282 = vld [vmem:[#allocation7 + $0x88] sm:$0xff]
    %v283 = vld [vmem:[#allocation7 + $0x90] sm:$0xff]
    %v284 = vld [vmem:[#allocation7 + $0x98] sm:$0xff]
    %v285 = vld [vmem:[#allocation7 + $0xa0] sm:$0xff]
    %v286 = vld [vmem:[#allocation7 + $0xa8] sm:$0xff]
    %v287 = vld [vmem:[#allocation7 + $0xb0] sm:$0xff]
    %v288 = vld [vmem:[#allocation7 + $0xb8] sm:$0xff]
    %v289 = vld [vmem:[#allocation7 + $0xc0] sm:$0xff]
    %v290 = vld [vmem:[#allocation7 + $0xc8] sm:$0xff]
    %v291 = vld [vmem:[#allocation7 + $0xd0] sm:$0xff]
    %v292 = vld [vmem:[#allocation7 + $0xd8] sm:$0xff]
    %v293 = vld [vmem:[#allocation7 + $0xe0] sm:$0xff]
    %v294 = vld [vmem:[#allocation7 + $0xe8] sm:$0xff]
    %v295 = vld [vmem:[#allocation7 + $0xf0] sm:$0xff]
    %v296 = vld [vmem:[#allocation7 + $0xf8] sm:$0xff]
    %v297 = vld [vmem:[%s6] sm:$0x3]
    %v299 = vlaneseq
    %v300 = vshrl.u32 %v299, 7
    %v301 = vsub.s32 0, %v300
    %v302 = vrot.slane %v297, %v301
    %v303 = vlaneseq
    %v304 = vshrl.u32 %v303, 7
    %v305 = vsub.s32 1, %v304
    %v306 = vrot.slane %v297, %v305
    %309 = vmatprep.subr.mxu0 %v266
    %310 = vmatpush1.msra.mxu0 %v265
    %311 = vmatprep.subr.mxu0 %v268
    %312 = vmatpush1.msra.mxu0 %v267
    %313 = vmatprep.subr.mxu0 %v270
    %314 = vmatpush1.msra.mxu0 %v269
    %315 = vmatprep.subr.mxu0 %v272
    %316 = vmatpush1.msra.mxu0 %v271
    %317 = vmatprep.subr.mxu0 %v274
    %318 = vmatpush1.msra.mxu0 %v273
    %319 = vmatprep.subr.mxu0 %v276
    %320 = vmatpush1.msra.mxu0 %v275
    %321 = vmatprep.subr.mxu0 %v278
    %322 = vmatpush1.msra.mxu0 %v277
    %323 = vmatprep.subr.mxu0 %v280
    %324 = vmatpush1.msra.mxu0 %v279
    %325 = vmatprep.subr.mxu0 %v282
    %326 = vmatpush1.msra.mxu0 %v281
    %327 = vmatprep.subr.mxu0 %v284
    %328 = vmatpush1.msra.mxu0 %v283
    %329 = vmatprep.subr.mxu0 %v286
    %330 = vmatpush1.msra.mxu0 %v285
    %331 = vmatprep.subr.mxu0 %v288
    %332 = vmatpush1.msra.mxu0 %v287
    %333 = vmatprep.subr.mxu0 %v290
    %334 = vmatpush1.msra.mxu0 %v289
    %335 = vmatprep.subr.mxu0 %v292
    %336 = vmatpush1.msra.mxu0 %v291
    %337 = vmatprep.subr.mxu0 %v294
    %338 = vmatpush1.msra.mxu0 %v293
    %339 = vmatprep.subr.mxu0 %v296
    %340 = vmatpush1.msra.mxu0 %v295
    %341 = vmatprep.subr.mxu0 0.0
    %342 = vmatpush1.msra.mxu0 0.0
    %343 = vmatprep.subr.mxu0 0.0
    %344 = vmatpush1.msra.mxu0 0.0
    %345 = vmatprep.subr.mxu0 0.0
    %346 = vmatpush1.msra.mxu0 0.0
    %347 = vmatprep.subr.mxu0 0.0
    %348 = vmatpush1.msra.mxu0 0.0
    %349 = vmatprep.subr.mxu0 0.0
    %350 = vmatpush1.msra.mxu0 0.0
    %351 = vmatprep.subr.mxu0 0.0
    %352 = vmatpush1.msra.mxu0 0.0
    %353 = vmatprep.subr.mxu0 0.0
    %354 = vmatpush1.msra.mxu0 0.0
    %355 = vmatprep.subr.mxu0 0.0
    %356 = vmatpush1.msra.mxu0 0.0
    %357 = vmatprep.subr.mxu0 0.0
    %358 = vmatpush1.msra.mxu0 0.0
    %359 = vmatprep.subr.mxu0 0.0
    %360 = vmatpush1.msra.mxu0 0.0
    %361 = vmatprep.subr.mxu0 0.0
    %362 = vmatpush1.msra.mxu0 0.0
    %363 = vmatprep.subr.mxu0 0.0
    %364 = vmatpush1.msra.mxu0 0.0
    %365 = vmatprep.subr.mxu0 0.0
    %366 = vmatpush1.msra.mxu0 0.0
    %367 = vmatprep.subr.mxu0 0.0
    %368 = vmatpush1.msra.mxu0 0.0
    %369 = vmatprep.subr.mxu0 0.0
    %370 = vmatpush1.msra.mxu0 0.0
    %371 = vmatprep.subr.mxu0 0.0
    %372 = vmatpush1.msra.mxu0 0.0
    %373 = vmatprep.mubr.f32.mxu0 0.0
    %374 = vmatmul.mubr.f32.gmra.mrb[0].mxu0 %v264
    %v375 = vpop.f32.mrb[0].mxu0
    %v376 = vadd.f32 %v302, %v375
    %v377 = vpop.f32.mrb[0].mxu0
    %v378 = vadd.f32 %v306, %v377
    %379 = vdwg.mxu0
    %v380 = vmax.f32 %v376, 0.0
    %v381 = vmax.f32 %v378, 0.0
    %v382 = vadd.f32 %v380, 1.0
    %v383 = vadd.f32 %v381, 1.0
    %v384 = vmax.f32 %v382, 1.0
    %v385 = vmax.f32 %v383, 1.0
    %v386 = vmin.f32 %v384, 15.0
    %v387 = vmin.f32 %v385, 15.0
    %v390 = vcombine.low %v386, %v387
    %v391 = vcombine.high %v386, %v387
    %v393 = vunpack.c.l.s4 1983009808
    %v394 = vunpack.c.0.s8 %v393
    %v395 = vlaneseq
    %v396 = vshrl.u32 %v395, 7
    %v397 = vsub.s32 %v394, %v396
    %v398 = vrot.slane %v390, %v397
    %v400 = vunpack.c.l.s4 1983009808
    %v401 = vunpack.c.0.s8 %v400
    %v402 = vlaneseq
    %v403 = vshrl.u32 %v402, 7
    %v404 = vsub.s32 %v401, %v403
    %v405 = vrot.slane %v391, %v404
    %v406 = vcombine.high %v398, %v398
    %v407 = vcombine.high %v405, %v405
    %412 = vst [vmem:[#allocation9] sm:$0xf] %v398
    %413 = vst [vmem:[#allocation9 + $0x4] sm:$0xf] %v406
    %414 = vst [vmem:[#allocation9 + $0x8] sm:$0xf] %v405
    %415 = vst [vmem:[#allocation9 + $0xc] sm:$0xf] %v407
    // Predicated region
    $region46: #{_fwd.1} parent=1 // pred_check
      _
    $region47: #{_fwd.1} parent=1 // pred_check_branch
      %417 = sbr.rel (0) target = $region49
    $region48: #{_fwd.1} parent=1 // pred_region
      // Predicated region
      $region50: #{_fwd.1} parent=48 // pred_check
        _
      $region51: #{_fwd.1} parent=48 // pred_check_branch
        %419 = sbr.rel (0) target = $region53
      $region52: #{_fwd.1} parent=48 // pred_region
        // Predicated region
        $region54: #{_fwd.1} parent=52 // pred_check
          _
        $region55: #{_fwd.1} parent=52 // pred_check_branch
          %421 = sbr.rel target = $region57
        $region56: #{_fwd.1} parent=52 // pred_region
          // Predicated region
          $region69: #{_fwd.1} parent=56 // pred_check
            _
          $region70: #{_fwd.1} parent=56 // pred_check_branch
            %436 = sbr.rel (0) target = $region72
          $region71: #{_fwd.1} parent=56 // pred_region
            loop: start=0, step=1, limit=1
            $region73: #{_fwd.1} parent=71 // loop_pre_header
              _
            $region74: #{_fwd.1} parent=71 // loop_header
              %s439 = sphi 0, %s443
              %p440 = scmp.ge.s32.totalorder %s439, 1
              %s444 = sphi [#allocation9], [#allocation9]
              %s445 = sphi %s7, %s7
            $region75: #{_fwd.1} parent=71 // loop_header_branch
              %442 = sbr.rel (%p440) target = $region79
            $region76: #{_fwd.1} parent=71 // loop_body
              %v446 = vld [vmem:[%s444] sm:$0xf]
              %447 = vst [vmem:[%s445] sm:$0xf] %v446
            $region77: #{_fwd.1} parent=71 // loop_footer
              %s443 = sadd.s32 1, %s439
            $region78: #{_fwd.1} parent=71 // loop_footer_branch
              %438 = sbr.rel target = $region74
            $region79: #{_fwd.1} parent=71 // loop_exit
              _
          $region72: #{_fwd.1} parent=56 // pred_fallthru
            _
        $region57: #{_fwd.1} parent=52 // pred_fallthru
          _
        // Predicated region
        $region58: #{_fwd.1} parent=52 // pred_check
          _
        $region59: #{_fwd.1} parent=52 // pred_check_branch
          %423 = sbr.rel (0) target = $region61
        $region60: #{_fwd.1} parent=52 // pred_region
          loop: start=0, step=1, limit=1
          $region62: #{_fwd.1} parent=60 // loop_pre_header
            _
          $region63: #{_fwd.1} parent=60 // loop_header
            %s426 = sphi 0, %s430
            %p427 = scmp.ge.s32.totalorder %s426, 1
            %s431 = sphi [#allocation9], [#allocation9]
            %s432 = sphi %s7, %s7
          $region64: #{_fwd.1} parent=60 // loop_header_branch
            %429 = sbr.rel (%p427) target = $region68
          $region65: #{_fwd.1} parent=60 // loop_body
            %v433 = vld [vmem:[%s431] sm:$0xf]
            %434 = vst [vmem:[%s432] sm:$0xf] %v433
          $region66: #{_fwd.1} parent=60 // loop_footer
            %s430 = sadd.s32 1, %s426
          $region67: #{_fwd.1} parent=60 // loop_footer_branch
            %425 = sbr.rel target = $region63
          $region68: #{_fwd.1} parent=60 // loop_exit
            _
        $region61: #{_fwd.1} parent=52 // pred_fallthru
          _
      $region53: #{_fwd.1} parent=48 // pred_fallthru
        _
      %448 = vnop
    $region49: #{_fwd.1} parent=1 // pred_fallthru
      _
    // Predicated region
    $region80: #{_fwd.1} parent=1 // pred_check
      _
    $region81: #{_fwd.1} parent=1 // pred_check_branch
      %450 = sbr.rel (0) target = $region83
    $region82: #{_fwd.1} parent=1 // pred_region
      _
    $region83: #{_fwd.1} parent=1 // pred_fallthru
      _
    %451 = vsyncpa [#allocation3], 1
    %452 = vsyncpa [#allocation5], 1
    %453 = vsyncpa [#allocation8], 1

</llo_original>
